<compile_context>
chip_gen: v5e
topology: v5e:2x2
jax: 0.10.0
libtpu: 0.0.40
codegen_flags: <defaults>
</compile_context>

<pallas_src>
import functools
from collections import defaultdict

import jax
import jax.numpy as jnp
from jax import lax
from jax.experimental import pallas as pl
from jax.experimental.pallas import tpu as pltpu

LANES = 128
SUBLANES = 8
# Fixed per-block HBM byte budget (scaled by the input dtype's itemsize) so the
# DMA-time / per-step-overhead ratio stays constant for f32 / bf16 / int8.
TARGET_BLOCK_BYTES = 4 * 1024 * 1024      # 4 MiB block -> 8 MiB double-buffered
VMEM_LIMIT_BYTES = 32 * 1024 * 1024       # fits v5e/v6e (128 MiB) and v7x (64 MiB)

# Module-level accumulator dicts, mirroring the PyTorch globals.
maxima = defaultdict(float)
means = defaultdict(float)
minima = defaultdict(float)
sqmeans = defaultdict(float)
variances = defaultdict(float)


def _round_up(a, b):
    return (a + b - 1) // b * b


def _stats_kernel(x_ref, o_ref, sum_ref, sq_ref, min_ref, max_ref, *,
                  blocks_per_split, last_block, mask_rows, mask_elems,
                  tail_rows):
    """Grid = (splits, blocks_per_split); axis 1 carries the reduction.

    sum/sq/min/max_ref are (8, 128) f32 VMEM vector accumulators persisting
    across the inner (reduction) axis.  At the last inner step of each split
    the raw vector partials are copied to o_ref[0, 0..3]; all scalar
    finalization happens outside the kernel.
    """
    s = pl.program_id(0)
    j = pl.program_id(1)
    g = s * blocks_per_split + j          # global block index

    @pl.when(j == 0)
    def _():
        sum_ref[...] = jnp.zeros_like(sum_ref)
        sq_ref[...] = jnp.zeros_like(sq_ref)
        min_ref[...] = jnp.full_like(min_ref, jnp.inf)
        max_ref[...] = jnp.full_like(max_ref, -jnp.inf)

    def accumulate(x_sum, x_min, x_max):
        # Fold sublanes into the (8, LANES) vector accumulators: pure VPU
        # adds/mins/maxes, no cross-lane (XLU) work.
        nrows = x_sum.shape[0]

        def fold(v):
            return v.reshape(nrows // SUBLANES, SUBLANES, LANES)

        sum_ref[...] = sum_ref[...] + jnp.sum(fold(x_sum), axis=0)
        sq_ref[...] = sq_ref[...] + jnp.sum(fold(x_sum * x_sum), axis=0)
        min_ref[...] = jnp.minimum(min_ref[...], jnp.min(fold(x_min), axis=0))
        max_ref[...] = jnp.maximum(max_ref[...], jnp.max(fold(x_max), axis=0))

    masked = (mask_rows is not None) or (mask_elems is not None)
    if masked:
        # Steady state: plain accumulate, no mask work (perf feedback #1).
        @pl.when(g != last_block)
        def _():
            x = x_ref[...].astype(jnp.float32)
            accumulate(x, x, x)

        # Only the single global last block carries padding / overhang.  Load
        # just the (static) valid tail rows and mask within them.
        @pl.when(g == last_block)
        def _():
            xt = x_ref[:tail_rows, :].astype(jnp.float32)
            ridx = lax.broadcasted_iota(jnp.int32, (tail_rows, LANES), 0)
            if mask_elems is None:
                # Lane-aligned total: row-only mask (1 iota + 1 compare).
                valid = ridx < mask_rows
            else:
                # Host-padded, non-lane-aligned total: element mask.
                cidx = lax.broadcasted_iota(jnp.int32, (tail_rows, LANES), 1)
                valid = (ridx * LANES + cidx) < mask_elems
            accumulate(jnp.where(valid, xt, jnp.float32(0.0)),
                       jnp.where(valid, xt, jnp.float32(jnp.inf)),
                       jnp.where(valid, xt, jnp.float32(-jnp.inf)))
    else:
        x = x_ref[...].astype(jnp.float32)
        accumulate(x, x, x)

    @pl.when(j == blocks_per_split - 1)
    def _():
        o_ref[0, 0, :, :] = sum_ref[...]
        o_ref[0, 1, :, :] = sq_ref[...]
        o_ref[0, 2, :, :] = min_ref[...]
        o_ref[0, 3, :, :] = max_ref[...]


def _stats_impl(x):
    """Returns stats[5] = [mean, mean(x^2), var_unbiased, min, max]."""
    total = int(x.size)
    flat = x.reshape(-1)
    itemsize = int(jnp.dtype(x.dtype).itemsize)

    # Host pad only for tiny inputs or non-lane-aligned totals (cheap there);
    # large lane-aligned inputs are never copied.
    if total % LANES != 0 or total < SUBLANES * LANES:
        padded_total = _round_up(max(total, 1), SUBLANES * LANES)
        flat = jnp.pad(flat, (0, padded_total - total))
    else:
        padded_total = total

    rows = padded_total // LANES
    budget_rows = max(SUBLANES,
                      (TARGET_BLOCK_BYTES // (LANES * itemsize))
                      // SUBLANES * SUBLANES)
    row_tile = min(rows // SUBLANES * SUBLANES, budget_rows)
    grid_n = pl.cdiv(rows, row_tile)

    # Mask parameters for the single (global) last block -- all static ints.
    block_elems = row_tile * LANES
    last_valid_elems = total - (grid_n - 1) * block_elems
    if last_valid_elems < block_elems:
        if total % LANES == 0:
            mask_rows = total // LANES - (grid_n - 1) * row_tile
            mask_elems = None
            valid_tail_rows = mask_rows
        else:
            mask_rows = None
            mask_elems = last_valid_elems
            valid_tail_rows = pl.cdiv(last_valid_elems, LANES)
        tail_rows = min(_round_up(valid_tail_rows, SUBLANES), row_tile)
    else:
        mask_rows = None
        mask_elems = None
        tail_rows = row_tile

    # 2-way row split on a leading "parallel" axis: both TensorCores on v7x;
    # sequential (and essentially free) on 1-TC v5e/v6e.  Only when the block
    # count divides evenly so no padded/wasted block DMA exists.
    nsplit = 2 if (grid_n >= 2 and grid_n % 2 == 0) else 1
    bps = grid_n // nsplit

    xf = flat.reshape(rows, LANES)

    parts = pl.pallas_call(
        functools.partial(_stats_kernel,
                          blocks_per_split=bps,
                          last_block=grid_n - 1,
                          mask_rows=mask_rows,
                          mask_elems=mask_elems,
                          tail_rows=tail_rows),
        out_shape=jax.ShapeDtypeStruct((nsplit, 4, SUBLANES, LANES),
                                       jnp.float32),
        grid_spec=pltpu.PrefetchScalarGridSpec(
            num_scalar_prefetch=0,
            grid=(nsplit, bps),
            in_specs=[pl.BlockSpec((row_tile, LANES),
                                   lambda s, j: (s * bps + j, 0))],
            out_specs=pl.BlockSpec((1, 4, SUBLANES, LANES),
                                   lambda s, j: (s, 0, 0, 0)),
            scratch_shapes=[pltpu.VMEM((SUBLANES, LANES), jnp.float32)
                            for _ in range(4)],
        ),
        compiler_params=pltpu.CompilerParams(
            dimension_semantics=("parallel", "arbitrary"),
            vmem_limit_bytes=VMEM_LIMIT_BYTES,
        ),
    )(xf)

    # Tiny cross-lane + cross-split combine (a few KB) done in plain XLA.
    n = jnp.float32(total)
    s = jnp.sum(parts[:, 0])
    sq = jnp.sum(parts[:, 1])
    mn = jnp.min(parts[:, 2])
    mx = jnp.max(parts[:, 3])
    mean = s / n
    sqmean = sq / n
    # torch.var default is unbiased (correction=1).  Clamp tiny negatives from
    # the one-pass formula.
    denom = jnp.maximum(n - jnp.float32(1.0), jnp.float32(1.0))
    var = jnp.maximum((sq - s * s / n) / denom, jnp.float32(0.0))
    return jnp.stack([mean, sqmean, var, mn, mx])


layer_statistics_stats = jax.jit(_stats_impl)


class LayerStatistics:
    """JAX/Pallas port of the PyTorch LayerStatistics module (no parameters)."""

    def __init__(self, name):
        self.name = name

    def __call__(self, x):
        stats = layer_statistics_stats(x)
        # Host sync mirrors the float(...) calls in the PyTorch module.
        stats = jax.device_get(stats)
        means[self.name] += float(stats[0])
        sqmeans[self.name] += float(stats[1])
        variances[self.name] += float(stats[2])
        minima[self.name] = min(minima[self.name], float(stats[3]))
        maxima[self.name] = max(maxima[self.name], float(stats[4]))
        return x  # pass-through: original array, no copy through the kernel


def _check(name, x, tol_mean=1e-4, tol_sq=1e-3, tol_var=1e-3, tol_mm=1e-6):
    layer = LayerStatistics(name)
    y = layer(x)
    y = jax.block_until_ready(y)

    xf32 = x.astype(jnp.float32)
    ref_mean = float(jnp.mean(xf32))
    ref_sqmean = float(jnp.mean(xf32 ** 2))
    ref_var = float(jnp.var(xf32, ddof=1))
    ref_min = float(jnp.min(xf32))
    ref_max = float(jnp.max(xf32))

    assert y is x or bool(jnp.array_equal(y, x)), f"{name}: pass-through mismatch"
    assert abs(means[name] - ref_mean) < tol_mean, f"{name}: mean"
    assert abs(sqmeans[name] - ref_sqmean) < tol_sq, f"{name}: sqmean"
    assert abs(variances[name] - ref_var) < tol_var, f"{name}: var"
    assert abs(minima[name] - min(0.0, ref_min)) < tol_mm, f"{name}: min"
    assert abs(maxima[name] - max(0.0, ref_max)) < tol_mm, f"{name}: max"


if __name__ == "__main__":
    key = jax.random.PRNGKey(0)
    k1, k2, k3, k4, k5 = jax.random.split(key, 5)

    # Primary case from the module spec (single full block, exact tiling).
    x1 = jax.random.normal(k1, (2, 4, 16, 16), dtype=jnp.float32)
    _check("conv1", x1)

    # Odd shape: host pad + element mask path (mask gated to last block).
    x2 = jax.random.normal(k2, (3, 5, 7, 11), dtype=jnp.float32) + 2.0
    _check("conv2", x2)

    # Larger case: even block count -> 2-way parallel split path.
    x3 = jax.random.normal(k3, (8, 64, 64, 64), dtype=jnp.float32)
    _check("conv3", x3)

    # Overhanging (partial) last block, lane-aligned -> row-only mask, no pad.
    x4 = jax.random.normal(k4, (2051, 128), dtype=jnp.float32)
    _check("conv4", x4)

    # bf16 input: exercises the dtype-scaled block size + in-kernel upcast.
    x5 = jax.random.normal(k5, (2, 4, 16, 16), dtype=jnp.float32).astype(jnp.bfloat16)
    _check("conv5", x5, tol_mean=1e-3, tol_sq=1e-2, tol_var=1e-2)

    print("KERNEL_OK")
</pallas_src>

<mosaic_0001>
module attributes {stable_mosaic.version = 11 : i64} {
  func.func @_stats_kernel(%arg0: i32, %arg1: i32, %arg2: memref<16x128xf32, #tpu.memory_space<vmem>>, %arg3: memref<1x4x8x128xf32, #tpu.memory_space<vmem>>, %arg4: memref<8x128xf32, #tpu.memory_space<vmem>>, %arg5: memref<8x128xf32, #tpu.memory_space<vmem>>, %arg6: memref<8x128xf32, #tpu.memory_space<vmem>>, %arg7: memref<8x128xf32, #tpu.memory_space<vmem>>) attributes {dimension_semantics = [#tpu.dimension_semantics<parallel>, #tpu.dimension_semantics<arbitrary>], iteration_bounds = array<i64: 1, 1>, scalar_prefetch = 0 : i64, scratch_operands = 4 : i64, tpu.core_type = #tpu.core_type<tc>, window_params = [{transform_indices = @transform_0, window_bounds = array<i64: 16, 128>}, {transform_indices = @transform_1, window_bounds = array<i64: 1, 4, 8, 128>}]} {
    %c0_i32 = arith.constant 0 : i32
    %0 = arith.cmpi eq, %arg1, %c0_i32 : i32
    %1 = arith.extui %0 : i1 to i32
    %c0_i32_0 = arith.constant 0 : i32
    %2 = arith.cmpi ne, %1, %c0_i32_0 : i32
    scf.if %2 {
      %cst_23 = arith.constant 0.000000e+00 : f32
      %28 = vector.broadcast %cst_23 : f32 to vector<8x128xf32>
      %c0_24 = arith.constant 0 : index
      %c0_25 = arith.constant 0 : index
      %29 = vector.load %arg4[%c0_24, %c0_25] : memref<8x128xf32, #tpu.memory_space<vmem>>, vector<8x128xf32>
      tpu.vector_store %arg4[%c0_24, %c0_25], %28 {strides = array<i32>} : memref<8x128xf32, #tpu.memory_space<vmem>>, vector<8x128xf32>,
      %cst_26 = arith.constant 0.000000e+00 : f32
      %30 = vector.broadcast %cst_26 : f32 to vector<8x128xf32>
      %c0_27 = arith.constant 0 : index
      %c0_28 = arith.constant 0 : index
      %31 = vector.load %arg5[%c0_27, %c0_28] : memref<8x128xf32, #tpu.memory_space<vmem>>, vector<8x128xf32>
      tpu.vector_store %arg5[%c0_27, %c0_28], %30 {strides = array<i32>} : memref<8x128xf32, #tpu.memory_space<vmem>>, vector<8x128xf32>,
      %cst_29 = arith.constant 0x7F800000 : f32
      %32 = vector.broadcast %cst_29 : f32 to vector<8x128xf32>
      %c0_30 = arith.constant 0 : index
      %c0_31 = arith.constant 0 : index
      %33 = vector.load %arg6[%c0_30, %c0_31] : memref<8x128xf32, #tpu.memory_space<vmem>>, vector<8x128xf32>
      tpu.vector_store %arg6[%c0_30, %c0_31], %32 {strides = array<i32>} : memref<8x128xf32, #tpu.memory_space<vmem>>, vector<8x128xf32>,
      %cst_32 = arith.constant 0xFF800000 : f32
      %34 = vector.broadcast %cst_32 : f32 to vector<8x128xf32>
      %c0_33 = arith.constant 0 : index
      %c0_34 = arith.constant 0 : index
      %35 = vector.load %arg7[%c0_33, %c0_34] : memref<8x128xf32, #tpu.memory_space<vmem>>, vector<8x128xf32>
      tpu.vector_store %arg7[%c0_33, %c0_34], %34 {strides = array<i32>} : memref<8x128xf32, #tpu.memory_space<vmem>>, vector<8x128xf32>,
    } else {
    }
    %c0 = arith.constant 0 : index
    %c0_1 = arith.constant 0 : index
    %3 = vector.load %arg2[%c0, %c0_1] : memref<16x128xf32, #tpu.memory_space<vmem>>, vector<16x128xf32>
    %c0_2 = arith.constant 0 : index
    %c0_3 = arith.constant 0 : index
    %4 = vector.load %arg4[%c0_2, %c0_3] : memref<8x128xf32, #tpu.memory_space<vmem>>, vector<8x128xf32>
    %5 = vector.shape_cast %3 : vector<16x128xf32> to vector<2x8x128xf32>
    %cst = arith.constant dense<0.000000e+00> : vector<8x128xf32>
    %6 = vector.multi_reduction <add>, %5, %cst [0] : vector<2x8x128xf32> to vector<8x128xf32>
    %7 = arith.addf %4, %6 : vector<8x128xf32>
    %c0_4 = arith.constant 0 : index
    %c0_5 = arith.constant 0 : index
    %8 = vector.load %arg4[%c0_4, %c0_5] : memref<8x128xf32, #tpu.memory_space<vmem>>, vector<8x128xf32>
    tpu.vector_store %arg4[%c0_4, %c0_5], %7 {strides = array<i32>} : memref<8x128xf32, #tpu.memory_space<vmem>>, vector<8x128xf32>,
    %c0_6 = arith.constant 0 : index
    %c0_7 = arith.constant 0 : index
    %9 = vector.load %arg5[%c0_6, %c0_7] : memref<8x128xf32, #tpu.memory_space<vmem>>, vector<8x128xf32>
    %10 = arith.mulf %3, %3 : vector<16x128xf32>
    %11 = vector.shape_cast %10 : vector<16x128xf32> to vector<2x8x128xf32>
    %cst_8 = arith.constant dense<0.000000e+00> : vector<8x128xf32>
    %12 = vector.multi_reduction <add>, %11, %cst_8 [0] : vector<2x8x128xf32> to vector<8x128xf32>
    %13 = arith.addf %9, %12 : vector<8x128xf32>
    %c0_9 = arith.constant 0 : index
    %c0_10 = arith.constant 0 : index
    %14 = vector.load %arg5[%c0_9, %c0_10] : memref<8x128xf32, #tpu.memory_space<vmem>>, vector<8x128xf32>
    tpu.vector_store %arg5[%c0_9, %c0_10], %13 {strides = array<i32>} : memref<8x128xf32, #tpu.memory_space<vmem>>, vector<8x128xf32>,
    %c0_11 = arith.constant 0 : index
    %c0_12 = arith.constant 0 : index
    %15 = vector.load %arg6[%c0_11, %c0_12] : memref<8x128xf32, #tpu.memory_space<vmem>>, vector<8x128xf32>
    %16 = vector.shape_cast %3 : vector<16x128xf32> to vector<2x8x128xf32>
    %cst_13 = arith.constant dense<0x7F800000> : vector<8x128xf32>
    %17 = vector.multi_reduction <minimumf>, %16, %cst_13 [0] : vector<2x8x128xf32> to vector<8x128xf32>
    %18 = arith.minimumf %15, %17 : vector<8x128xf32>
    %c0_14 = arith.constant 0 : index
    %c0_15 = arith.constant 0 : index
    %19 = vector.load %arg6[%c0_14, %c0_15] : memref<8x128xf32, #tpu.memory_space<vmem>>, vector<8x128xf32>
    tpu.vector_store %arg6[%c0_14, %c0_15], %18 {strides = array<i32>} : memref<8x128xf32, #tpu.memory_space<vmem>>, vector<8x128xf32>,
    %c0_16 = arith.constant 0 : index
    %c0_17 = arith.constant 0 : index
    %20 = vector.load %arg7[%c0_16, %c0_17] : memref<8x128xf32, #tpu.memory_space<vmem>>, vector<8x128xf32>
    %21 = vector.shape_cast %3 : vector<16x128xf32> to vector<2x8x128xf32>
    %cst_18 = arith.constant dense<0xFF800000> : vector<8x128xf32>
    %22 = vector.multi_reduction <maximumf>, %21, %cst_18 [0] : vector<2x8x128xf32> to vector<8x128xf32>
    %23 = arith.maximumf %20, %22 : vector<8x128xf32>
    %c0_19 = arith.constant 0 : index
    %c0_20 = arith.constant 0 : index
    %24 = vector.load %arg7[%c0_19, %c0_20] : memref<8x128xf32, #tpu.memory_space<vmem>>, vector<8x128xf32>
    tpu.vector_store %arg7[%c0_19, %c0_20], %23 {strides = array<i32>} : memref<8x128xf32, #tpu.memory_space<vmem>>, vector<8x128xf32>,
    %c0_i32_21 = arith.constant 0 : i32
    %25 = arith.cmpi eq, %arg1, %c0_i32_21 : i32
    %26 = arith.extui %25 : i1 to i32
    %c0_i32_22 = arith.constant 0 : i32
    %27 = arith.cmpi ne, %26, %c0_i32_22 : i32
    scf.if %27 {
      %c0_23 = arith.constant 0 : index
      %c0_24 = arith.constant 0 : index
      %28 = vector.load %arg4[%c0_23, %c0_24] : memref<8x128xf32, #tpu.memory_space<vmem>>, vector<8x128xf32>
      %c0_25 = arith.constant 0 : index
      %c0_26 = arith.constant 0 : index
      %c0_27 = arith.constant 0 : index
      %c0_28 = arith.constant 0 : index
      %29 = vector.load %arg3[%c0_25, %c0_26, %c0_27, %c0_28] : memref<1x4x8x128xf32, #tpu.memory_space<vmem>>, vector<1x1x8x128xf32>
      %30 = vector.shape_cast %29 : vector<1x1x8x128xf32> to vector<8x128xf32>
      %31 = vector.shape_cast %28 : vector<8x128xf32> to vector<1x1x8x128xf32>
      tpu.vector_store %arg3[%c0_25, %c0_26, %c0_27, %c0_28], %31 {strides = array<i32>} : memref<1x4x8x128xf32, #tpu.memory_space<vmem>>, vector<1x1x8x128xf32>,
      %c0_29 = arith.constant 0 : index
      %c0_30 = arith.constant 0 : index
      %32 = vector.load %arg5[%c0_29, %c0_30] : memref<8x128xf32, #tpu.memory_space<vmem>>, vector<8x128xf32>
      %c0_31 = arith.constant 0 : index
      %c1 = arith.constant 1 : index
      %c0_32 = arith.constant 0 : index
      %c0_33 = arith.constant 0 : index
      %33 = vector.load %arg3[%c0_31, %c1, %c0_32, %c0_33] : memref<1x4x8x128xf32, #tpu.memory_space<vmem>>, vector<1x1x8x128xf32>
      %34 = vector.shape_cast %33 : vector<1x1x8x128xf32> to vector<8x128xf32>
      %35 = vector.shape_cast %32 : vector<8x128xf32> to vector<1x1x8x128xf32>
      tpu.vector_store %arg3[%c0_31, %c1, %c0_32, %c0_33], %35 {strides = array<i32>} : memref<1x4x8x128xf32, #tpu.memory_space<vmem>>, vector<1x1x8x128xf32>,
      %c0_34 = arith.constant 0 : index
      %c0_35 = arith.constant 0 : index
      %36 = vector.load %arg6[%c0_34, %c0_35] : memref<8x128xf32, #tpu.memory_space<vmem>>, vector<8x128xf32>
      %c0_36 = arith.constant 0 : index
      %c2 = arith.constant 2 : index
      %c0_37 = arith.constant 0 : index
      %c0_38 = arith.constant 0 : index
      %37 = vector.load %arg3[%c0_36, %c2, %c0_37, %c0_38] : memref<1x4x8x128xf32, #tpu.memory_space<vmem>>, vector<1x1x8x128xf32>
      %38 = vector.shape_cast %37 : vector<1x1x8x128xf32> to vector<8x128xf32>
      %39 = vector.shape_cast %36 : vector<8x128xf32> to vector<1x1x8x128xf32>
      tpu.vector_store %arg3[%c0_36, %c2, %c0_37, %c0_38], %39 {strides = array<i32>} : memref<1x4x8x128xf32, #tpu.memory_space<vmem>>, vector<1x1x8x128xf32>,
      %c0_39 = arith.constant 0 : index
      %c0_40 = arith.constant 0 : index
      %40 = vector.load %arg7[%c0_39, %c0_40] : memref<8x128xf32, #tpu.memory_space<vmem>>, vector<8x128xf32>
      %c0_41 = arith.constant 0 : index
      %c3 = arith.constant 3 : index
      %c0_42 = arith.constant 0 : index
      %c0_43 = arith.constant 0 : index
      %41 = vector.load %arg3[%c0_41, %c3, %c0_42, %c0_43] : memref<1x4x8x128xf32, #tpu.memory_space<vmem>>, vector<1x1x8x128xf32>
      %42 = vector.shape_cast %41 : vector<1x1x8x128xf32> to vector<8x128xf32>
      %43 = vector.shape_cast %40 : vector<8x128xf32> to vector<1x1x8x128xf32>
      tpu.vector_store %arg3[%c0_41, %c3, %c0_42, %c0_43], %43 {strides = array<i32>} : memref<1x4x8x128xf32, #tpu.memory_space<vmem>>, vector<1x1x8x128xf32>,
    } else {
    }
    return
  }
  func.func @transform_0(%arg0: i32, %arg1: i32) -> (i32, i32) {
    %c1_i32 = arith.constant 1 : i32
    %0 = arith.muli %arg0, %c1_i32 : i32
    %1 = arith.addi %0, %arg1 : i32
    %c0_i32 = arith.constant 0 : i32
    %c0_i32_0 = arith.constant 0 : i32
    return %1, %c0_i32 : i32, i32
  }
  func.func @transform_1(%arg0: i32, %arg1: i32) -> (i32, i32, i32, i32) {
    %c0_i32 = arith.constant 0 : i32
    %c0_i32_0 = arith.constant 0 : i32
    %c0_i32_1 = arith.constant 0 : i32
    %c0_i32_2 = arith.constant 0 : i32
    return %arg0, %c0_i32, %c0_i32_0, %c0_i32_1 : i32, i32, i32, i32
  }
}

</mosaic_0001>

<llo_original>
// kernel: _stats_impl.1
$region0: #{_stats_impl.1}
  #allocation0 [shape = 'u32[]', space=smem, size = 0x4, offset = 0x4, fixed_abs, tag = 'smem constant byte address 0x4 - core index']
  #allocation1 [shape = 'u32[72,128]{1,0:T(1,128)}', space=vmem, size = 0x9000, scoped, tag = 'internal scratch']
  #allocation2 [shape = 'f32[8,128]{1,0:T(8,128)}', space=vmem, size = 0x1000, scoped, tag = 'scratch operand']
  #allocation3 [shape = 'f32[8,128]{1,0:T(8,128)}', space=vmem, size = 0x1000, scoped, tag = 'scratch operand']
  #allocation4 [shape = 'f32[8,128]{1,0:T(8,128)}', space=vmem, size = 0x1000, scoped, tag = 'scratch operand']
  #allocation5 [shape = 'f32[8,128]{1,0:T(8,128)}', space=vmem, size = 0x1000, scoped, tag = 'scratch operand']
  %s0 = inlined_call_operand.vmem [shape: f32[16,128], index: 0, kind: input, shape index: {}]
  %s1 = inlined_call_operand.vmem [shape: f32[1,4,8,128], index: 1, kind: output, shape index: {}]
  %s2 = sld [smem:[#allocation0]]
  $region22: #{_stats_impl.1} parent=0
    _
  %s4 = ssub.s32 1, %s2
  %s5 = scalar_select 0, %s4, %s2
  // Predicated region
  $region2: #{_stats_impl.1} parent=0 // pred_check
    _
  $region3: #{_stats_impl.1} parent=0 // pred_check_branch
    %7 = sbr.rel (0) target = $region5
  $region4: #{_stats_impl.1} parent=0 // pred_region
    %s8 = sadd.s32 0, 0
    %s9 = smul.u32 2, %s8
    %p10 = scmp.lt.s32.totalorder %s9, 1
    %s11 = scalar_select %p10, %s9, 1
    %s12 = smul.addr %s11, 8
    %s13 = scalar_lea.vmem %s0, %s12
    %s14 = sadd.s32 0, 0
    %s15 = smul.u32 2, %s14
  $region5: #{_stats_impl.1} parent=0 // pred_fallthru
    _
  %s16 = sadd.s32 0, 0
  %s17 = smul.u32 2, %s16
  %p18 = scmp.lt.s32.totalorder %s17, 1
  %s19 = scalar_select %p18, %s17, 1
  %s20 = smul.addr %s19, 8
  %s21 = scalar_lea.vmem %s0, %s20
  %s22 = sadd.s32 0, 0
  %s23 = smul.u32 2, %s22
  %p24 = scmp.lt.s32.totalorder %s23, 1
  %s25 = scalar_select %p24, %s23, 1
  %s26 = smul.addr %s25, 8
  %s27 = scalar_lea.vmem %s0, %s26
  %s28 = sadd.s32 0, 0
  %s29 = smul.u32 2, %s28
  %p30 = scmp.eq.s32.totalorder 0, 0
  // Predicated region
  $region6: #{_stats_impl.1} parent=0 // pred_check
    %p31 = pneg %p30
  $region7: #{_stats_impl.1} parent=0 // pred_check_branch
    %33 = sbr.rel (%p31) target = $region9
  $region8: #{_stats_impl.1} parent=0 // pred_region
    %34 = vst [vmem:[#allocation2] sm:$0xff] 0.0
    %35 = vst [vmem:[#allocation3] sm:$0xff] 0.0
    %36 = vst [vmem:[#allocation4] sm:$0xff] inf
    %37 = vst [vmem:[#allocation5] sm:$0xff] -inf
  $region9: #{_stats_impl.1} parent=0 // pred_fallthru
    _
  %v38 = vld [vmem:[%s27] sm:$0xff]
  %v39 = vld [vmem:[%s27 + $0x8] sm:$0xff]
  %v40 = vld [vmem:[#allocation2] sm:$0xff]
  %v41 = vadd.f32 %v38, %v39
  %v42 = vadd.f32 %v40, %v41
  %43 = vst [vmem:[#allocation2] sm:$0xff] %v42
  %v44 = vld [vmem:[#allocation3] sm:$0xff]
  %v45 = vmul.f32 %v38, %v38
  %v46 = vmul.f32 %v39, %v39
  %v47 = vadd.f32 %v45, %v46
  %v48 = vadd.f32 %v44, %v47
  %49 = vst [vmem:[#allocation3] sm:$0xff] %v48
  %v50 = vld [vmem:[#allocation4] sm:$0xff]
  %v51 = vmin.f32 %v38, %v39
  %v52 = vmin.f32 %v50, %v51
  %53 = vst [vmem:[#allocation4] sm:$0xff] %v52
  %v54 = vld [vmem:[#allocation5] sm:$0xff]
  %v55 = vmax.f32 %v38, %v39
  %v56 = vmax.f32 %v54, %v55
  %57 = vst [vmem:[#allocation5] sm:$0xff] %v56
  // Predicated region
  $region10: #{_stats_impl.1} parent=0 // pred_check
    %p58 = pneg %p30
  $region11: #{_stats_impl.1} parent=0 // pred_check_branch
    %60 = sbr.rel (%p58) target = $region13
  $region12: #{_stats_impl.1} parent=0 // pred_region
    %v61 = vld [vmem:[#allocation2] sm:$0xff]
    %62 = vst [vmem:[%s1] sm:$0xff] %v61
    %v63 = vld [vmem:[#allocation3] sm:$0xff]
    %s64 = scalar_lea.vmem %s1, 8
    %65 = vst [vmem:[%s64] sm:$0xff] %v63
    %v66 = vld [vmem:[#allocation4] sm:$0xff]
    %s67 = scalar_lea.vmem %s1, 16
    %68 = vst [vmem:[%s67] sm:$0xff] %v66
    %v69 = vld [vmem:[#allocation5] sm:$0xff]
    %s70 = scalar_lea.vmem %s1, 24
    %71 = vst [vmem:[%s70] sm:$0xff] %v69
  $region13: #{_stats_impl.1} parent=0 // pred_fallthru
    _
  // Predicated region
  $region14: #{_stats_impl.1} parent=0 // pred_check
    _
  $region15: #{_stats_impl.1} parent=0 // pred_check_branch
    %73 = sbr.rel (0) target = $region17
  $region16: #{_stats_impl.1} parent=0 // pred_region
    _
  $region17: #{_stats_impl.1} parent=0 // pred_fallthru
    _
  // Predicated region
  $region18: #{_stats_impl.1} parent=0 // pred_check
    _
  $region19: #{_stats_impl.1} parent=0 // pred_check_branch
    %75 = sbr.rel (0) target = $region21
  $region20: #{_stats_impl.1} parent=0 // pred_region
    _
  $region21: #{_stats_impl.1} parent=0 // pred_fallthru
    _

</llo_original>
